<compile_context>
chip_gen: v5e
topology: v5e:2x2
jax: 0.10.0
libtpu: 0.0.40
codegen_flags: <defaults>
</compile_context>

<pallas_src>
import functools

import jax
import jax.numpy as jnp
from jax.experimental import pallas as pl
from jax.experimental.pallas import tpu as pltpu


def _pad128(n: int) -> int:
    return -(-n // 128) * 128


def _flexte_kernel(xs_ref, xp0_ref, xp1_ref, w_ref, w3_ref, wp0p_ref, wp1p_ref,
                   b_ref, o_ref, *, private: bool, lane_dense: bool):
    """One batch tile: merged linear heads + treatment-weighted combine.

    xs_ref  : (TB, D_s)   shared representation tile
    xp*_ref : (TB, D_p)   private representation tiles
    w_ref   : (1, TB) if lane_dense else (TB, 1)    treatment indicator
    w3_ref  : (D_s, 2|3)  columns [w_p0[:D_s] | w_p1[:D_s] | w_shared]   (resident)
    wp*p_ref: (D_p, 1)    private-part weight columns                     (resident)
    b_ref   : (2|3,) f32 in SMEM: [b_p0, b_p1, b_shared]
    o_ref   : (1, TB) if lane_dense else (TB, 1)
    """
    f32 = jnp.float32
    xs = xs_ref[...].astype(f32)
    xp0 = xp0_ref[...].astype(f32)
    xp1 = xp1_ref[...].astype(f32)

    # All shared-part matvecs merged into one MXU call -> (TB, 2|3).
    res = jnp.dot(xs, w3_ref[...].astype(f32), preferred_element_type=f32)
    p0 = res[:, 0:1] + jnp.dot(xp0, wp0p_ref[...].astype(f32),
                               preferred_element_type=f32)
    p1 = res[:, 1:2] + jnp.dot(xp1, wp1p_ref[...].astype(f32),
                               preferred_element_type=f32)

    if lane_dense:
        # Rearrange the per-row results to lane-dense rows (one XLU transpose), then
        # combine against the lane-dense W row and store an unmasked (1, TB) slab.
        cols = [p0, p1] if private else [p0, p1, res[:, 2:3]]
        rows = jnp.transpose(jnp.concatenate(cols, axis=1))   # (2|3, TB)
        w = w_ref[...].astype(f32)                             # (1, TB)
        out = (1.0 - w) * (rows[0:1, :] + b_ref[0]) + w * (rows[1:2, :] + b_ref[1])
        if not private:
            out = out + (rows[2:3, :] + b_ref[2])
    else:
        w = w_ref[...].astype(f32)                             # (TB, 1)
        out = (1.0 - w) * (p0 + b_ref[0]) + w * (p1 + b_ref[1])
        if not private:
            out = out + (res[:, 2:3] + b_ref[2])

    o_ref[...] = out.astype(o_ref.dtype)


def _prep_weights(params, D_s, D_p, private):
    f32 = jnp.float32
    cols = [params["w_p0"][:D_s], params["w_p1"][:D_s]]
    bias = [params["b_p0"], params["b_p1"]]
    if not private:                       # skip shared head entirely when private
        cols.append(params["w_shared"])
        bias.append(params["b_shared"])
    w3 = jnp.stack([c.astype(f32) for c in cols], axis=1)          # (D_s, 2|3)
    wp0p = params["w_p0"][D_s:].astype(f32).reshape(D_p, 1)
    wp1p = params["w_p1"][D_s:].astype(f32).reshape(D_p, 1)
    b = jnp.stack([jnp.asarray(x, f32) for x in bias])             # (2|3,)
    return w3, wp0p, wp1p, b


def _tile_and_vmem(B, D_s, D_p, block_b, lane_dense):
    """Pick the batch tile against the *padded* VMEM footprint and a VMEM limit."""
    # Padded bytes per batch row: feature tiles pad their last dim to 128 lanes; the
    # lane-dense (1, TB) W/out blocks pad their single row to 8 sublanes.  x2 for
    # double buffering.
    feat = 4 * (_pad128(D_s) + 2 * _pad128(D_p))
    w_out = 2 * (8 * 4 if lane_dense else 128 * 4)
    per_row = 2 * (feat + w_out)
    budget = 32 << 20                       # block budget; fits v5e/v6e/v7x with headroom
    if B <= block_b and B * per_row <= budget:
        tb = B                              # single tile: block == full array dims
    else:
        tb = max(128, (min(block_b, budget // per_row) // 128) * 128)
    vmem_limit = int(min(max(32 << 20, tb * per_row + (16 << 20)), 48 << 20))
    return tb, vmem_limit


_LANE_DENSE_OK = None   # cache: does this jaxlib lower the lane-dense (transpose) path?


def flexte_output_layer(tensors, params, *, private: bool, block_b: int = 4096):
    """Pallas equivalent of FlexTEOutputLayer.forward (dropout=False).

    tensors: [X_s (B, D_s), X_p0 (B, D_p), X_p1 (B, D_p), W (B,)]
    params:  w_shared (D_s,), b_shared (), w_p0 (D_s+D_p,), b_p0 (),
             w_p1 (D_s+D_p,), b_p1 ()
    Returns: (B,) float32 array (the PyTorch .squeeze() output).
    """
    global _LANE_DENSE_OK
    if len(tensors) != 4:
        raise ValueError(
            "Invalid number of tensors for the FlexTEOutputLayer. "
            "It requires X_s, X_p0, X_p1 and W as input")
    X_s, X_p0, X_p1, W = tensors
    B, D_s = X_s.shape
    _, D_p = X_p0.shape
    assert X_p1.shape == (B, D_p) and W.shape[0] == B

    w3, wp0p, wp1p, bias = _prep_weights(params, D_s, D_p, private)
    ncols = w3.shape[1]

    resident_specs = [
        pl.BlockSpec((D_s, ncols), lambda i: (0, 0)),                # w3 (resident)
        pl.BlockSpec((D_p, 1), lambda i: (0, 0)),                    # w_p0 private part
        pl.BlockSpec((D_p, 1), lambda i: (0, 0)),                    # w_p1 private part
        pl.BlockSpec(memory_space=pltpu.MemorySpace.SMEM),           # biases
    ]

    def run(lane_dense):
        tb, vmem_limit = _tile_and_vmem(B, D_s, D_p, block_b, lane_dense)
        ntiles = -(-B // tb)
        kernel = functools.partial(_flexte_kernel, private=private,
                                   lane_dense=lane_dense)
        cparams = pltpu.CompilerParams(
            dimension_semantics=("parallel",),   # independent batch tiles (2 TCs on v7x)
            vmem_limit_bytes=vmem_limit)
        row_spec = lambda d: pl.BlockSpec((tb, d), lambda i: (i, 0))

        if lane_dense:
            b_pad = ntiles * tb
            w_arr = W.astype(jnp.float32).reshape(1, B)
            if b_pad != B:
                w_arr = jnp.pad(w_arr, ((0, 0), (0, b_pad - B)))     # tiny (B floats)
            out = pl.pallas_call(
                kernel,
                out_shape=jax.ShapeDtypeStruct((1, b_pad), jnp.float32),
                grid=(ntiles,),
                in_specs=[row_spec(D_s), row_spec(D_p), row_spec(D_p),
                          pl.BlockSpec((1, tb), lambda i: (0, i))] + resident_specs,
                out_specs=pl.BlockSpec((1, tb), lambda i: (0, i)),
                compiler_params=cparams,
            )(X_s, X_p0, X_p1, w_arr, w3, wp0p, wp1p, bias)
            return out[0, :B]

        # Column-layout fallback (previous proven design, larger tiles + merged dots).
        w_arr = W.astype(jnp.float32).reshape(B, 1)
        out = pl.pallas_call(
            kernel,
            out_shape=jax.ShapeDtypeStruct((B, 1), jnp.float32),
            grid=(ntiles,),
            in_specs=[row_spec(D_s), row_spec(D_p), row_spec(D_p),
                      row_spec(1)] + resident_specs,
            out_specs=pl.BlockSpec((tb, 1), lambda i: (i, 0)),
            compiler_params=cparams,
        )(X_s, X_p0, X_p1, w_arr, w3, wp0p, wp1p, bias)
        return out[:, 0]

    if _LANE_DENSE_OK is not False:
        try:
            res = run(lane_dense=True)
            _LANE_DENSE_OK = True
            return res
        except Exception:
            _LANE_DENSE_OK = False          # Mosaic rejected the lane-dense lowering
    return run(lane_dense=False)


def _ref_forward(tensors, params, private):
    """Plain-JAX reference matching the PyTorch module."""
    X_s, X_p0, X_p1, W = tensors
    rep_p0 = jnp.concatenate([X_s, X_p0], axis=1) @ params["w_p0"] + params["b_p0"]
    rep_p1 = jnp.concatenate([X_s, X_p1], axis=1) @ params["w_p1"] + params["b_p1"]
    out = (1.0 - W) * rep_p0 + W * rep_p1
    if not private:
        out = out + (X_s @ params["w_shared"] + params["b_shared"])
    return out


if __name__ == "__main__":
    key = jax.random.PRNGKey(0)
    ks = jax.random.split(key, 10)

    # Shapes consistent with flextenet: n_units_in=24, n_units_in_p=24+12=36.
    D_s, D_p = 24, 12
    params = {
        "w_shared": 0.1 * jax.random.normal(ks[4], (D_s,), dtype=jnp.float32),
        "b_shared": jax.random.normal(ks[5], (), dtype=jnp.float32),
        "w_p0": 0.1 * jax.random.normal(ks[6], (D_s + D_p,), dtype=jnp.float32),
        "b_p0": jax.random.normal(ks[7], (), dtype=jnp.float32),
        "w_p1": 0.1 * jax.random.normal(ks[8], (D_s + D_p,), dtype=jnp.float32),
        "b_p1": jax.random.normal(ks[9], (), dtype=jnp.float32),
    }

    def make_tensors(B):
        X_s = jax.random.normal(ks[0], (B, D_s), dtype=jnp.float32)
        X_p0 = jax.random.normal(ks[1], (B, D_p), dtype=jnp.float32)
        X_p1 = jax.random.normal(ks[2], (B, D_p), dtype=jnp.float32)
        W = (jax.random.uniform(ks[3], (B,)) > 0.5).astype(jnp.float32)
        return [X_s, X_p0, X_p1, W]

    # (B, block_b): single-tile small batch + a multi-tile case that exercises the
    # grid, the lane-dense (1, TB) layout and the padded remainder tile.
    for B, bb in ((32, 4096), (300, 128)):
        tensors = make_tensors(B)
        for private in (False, True):
            out = flexte_output_layer(tensors, params, private=private, block_b=bb)
            jax.block_until_ready(out)
            ref = _ref_forward(tensors, params, private)
            assert out.shape == (B,), out.shape
            err = float(jnp.max(jnp.abs(out - ref)))
            assert jnp.allclose(out, ref, atol=1e-5, rtol=1e-5), (B, private, err)

    print("KERNEL_OK")
</pallas_src>

<mosaic_0001>
module attributes {stable_mosaic.version = 11 : i64} {
  func.func @_flexte_kernel(%arg0: i32, %arg1: memref<32x24xf32, #tpu.memory_space<vmem>>, %arg2: memref<32x12xf32, #tpu.memory_space<vmem>>, %arg3: memref<32x12xf32, #tpu.memory_space<vmem>>, %arg4: memref<1x32xf32, #tpu.memory_space<vmem>>, %arg5: memref<24x3xf32, #tpu.memory_space<vmem>>, %arg6: memref<12x1xf32, #tpu.memory_space<vmem>>, %arg7: memref<12x1xf32, #tpu.memory_space<vmem>>, %arg8: memref<3xf32, #tpu.memory_space<smem>>, %arg9: memref<1x32xf32, #tpu.memory_space<vmem>>) attributes {dimension_semantics = [#tpu.dimension_semantics<parallel>], iteration_bounds = array<i64: 1>, scalar_prefetch = 0 : i64, scratch_operands = 0 : i64, tpu.core_type = #tpu.core_type<tc>, window_params = [{transform_indices = @transform_0, window_bounds = array<i64: 32, 24>}, {transform_indices = @transform_1, window_bounds = array<i64: 32, 12>}, {transform_indices = @transform_2, window_bounds = array<i64: 32, 12>}, {transform_indices = @transform_3, window_bounds = array<i64: 1, 32>}, {pipeline_mode = #tpu.pipeline_mode<synchronous>, transform_indices = @transform_4, window_bounds = array<i64: 24, 3>}, {pipeline_mode = #tpu.pipeline_mode<synchronous>, transform_indices = @transform_5, window_bounds = array<i64: 12, 1>}, {pipeline_mode = #tpu.pipeline_mode<synchronous>, transform_indices = @transform_6, window_bounds = array<i64: 12, 1>}, {transform_indices = @transform_7, window_bounds = array<i64: 3>}, {transform_indices = @transform_8, window_bounds = array<i64: 1, 32>}]} {
    %c0 = arith.constant 0 : index
    %c0_0 = arith.constant 0 : index
    %0 = vector.load %arg1[%c0, %c0_0] : memref<32x24xf32, #tpu.memory_space<vmem>>, vector<32x24xf32>
    %c0_1 = arith.constant 0 : index
    %c0_2 = arith.constant 0 : index
    %1 = vector.load %arg2[%c0_1, %c0_2] : memref<32x12xf32, #tpu.memory_space<vmem>>, vector<32x12xf32>
    %c0_3 = arith.constant 0 : index
    %c0_4 = arith.constant 0 : index
    %2 = vector.load %arg3[%c0_3, %c0_4] : memref<32x12xf32, #tpu.memory_space<vmem>>, vector<32x12xf32>
    %c0_5 = arith.constant 0 : index
    %c0_6 = arith.constant 0 : index
    %3 = vector.load %arg5[%c0_5, %c0_6] : memref<24x3xf32, #tpu.memory_space<vmem>>, vector<24x3xf32>
    %cst = arith.constant dense<0.000000e+00> : vector<32x3xf32>
    %4 = tpu.matmul %0, %3, %cst {dimension_numbers = #tpu.dot_dimension_numbers<[1], [0], [0], [1], [0, 0, 1, 1], [], []>} : vector<32x24xf32>, vector<24x3xf32>, vector<32x3xf32> -> vector<32x3xf32>
    %5 = vector.extract_strided_slice %4 {offsets = [0, 0], sizes = [32, 1], strides = [1, 1]} : vector<32x3xf32> to vector<32x1xf32>
    %c0_7 = arith.constant 0 : index
    %c0_8 = arith.constant 0 : index
    %6 = vector.load %arg6[%c0_7, %c0_8] : memref<12x1xf32, #tpu.memory_space<vmem>>, vector<12x1xf32>
    %cst_9 = arith.constant dense<0.000000e+00> : vector<32x1xf32>
    %7 = tpu.matmul %1, %6, %cst_9 {dimension_numbers = #tpu.dot_dimension_numbers<[1], [0], [0], [1], [0, 0, 1, 1], [], []>} : vector<32x12xf32>, vector<12x1xf32>, vector<32x1xf32> -> vector<32x1xf32>
    %8 = arith.addf %5, %7 : vector<32x1xf32>
    %9 = vector.extract_strided_slice %4 {offsets = [0, 1], sizes = [32, 1], strides = [1, 1]} : vector<32x3xf32> to vector<32x1xf32>
    %c0_10 = arith.constant 0 : index
    %c0_11 = arith.constant 0 : index
    %10 = vector.load %arg7[%c0_10, %c0_11] : memref<12x1xf32, #tpu.memory_space<vmem>>, vector<12x1xf32>
    %cst_12 = arith.constant dense<0.000000e+00> : vector<32x1xf32>
    %11 = tpu.matmul %2, %10, %cst_12 {dimension_numbers = #tpu.dot_dimension_numbers<[1], [0], [0], [1], [0, 0, 1, 1], [], []>} : vector<32x12xf32>, vector<12x1xf32>, vector<32x1xf32> -> vector<32x1xf32>
    %12 = arith.addf %9, %11 : vector<32x1xf32>
    %13 = vector.extract_strided_slice %4 {offsets = [0, 2], sizes = [32, 1], strides = [1, 1]} : vector<32x3xf32> to vector<32x1xf32>
    %14 = tpu.concatenate %8, %12, %13 in 1 : vector<32x1xf32>, vector<32x1xf32>, vector<32x1xf32> -> vector<32x3xf32>
    %15 = tpu.transpose %14, [1, 0] : vector<32x3xf32> -> vector<3x32xf32>
    %c0_13 = arith.constant 0 : index
    %c0_14 = arith.constant 0 : index
    %16 = vector.load %arg4[%c0_13, %c0_14] : memref<1x32xf32, #tpu.memory_space<vmem>>, vector<1x32xf32>
    %cst_15 = arith.constant 1.000000e+00 : f32
    %17 = vector.broadcast %cst_15 : f32 to vector<1x32xf32>
    %18 = arith.subf %17, %16 : vector<1x32xf32>
    %19 = vector.extract_strided_slice %15 {offsets = [0, 0], sizes = [1, 32], strides = [1, 1]} : vector<3x32xf32> to vector<1x32xf32>
    %c0_16 = arith.constant 0 : index
    %20 = memref.load %arg8[%c0_16] : memref<3xf32, #tpu.memory_space<smem>>
    %21 = vector.broadcast %20 : f32 to vector<1x32xf32>
    %22 = arith.addf %19, %21 : vector<1x32xf32>
    %23 = arith.mulf %18, %22 : vector<1x32xf32>
    %24 = vector.extract_strided_slice %15 {offsets = [1, 0], sizes = [1, 32], strides = [1, 1]} : vector<3x32xf32> to vector<1x32xf32>
    %c1 = arith.constant 1 : index
    %25 = memref.load %arg8[%c1] : memref<3xf32, #tpu.memory_space<smem>>
    %26 = vector.broadcast %25 : f32 to vector<1x32xf32>
    %27 = arith.addf %24, %26 : vector<1x32xf32>
    %28 = arith.mulf %16, %27 : vector<1x32xf32>
    %29 = arith.addf %23, %28 : vector<1x32xf32>
    %30 = vector.extract_strided_slice %15 {offsets = [2, 0], sizes = [1, 32], strides = [1, 1]} : vector<3x32xf32> to vector<1x32xf32>
    %c2 = arith.constant 2 : index
    %31 = memref.load %arg8[%c2] : memref<3xf32, #tpu.memory_space<smem>>
    %32 = vector.broadcast %31 : f32 to vector<1x32xf32>
    %33 = arith.addf %30, %32 : vector<1x32xf32>
    %34 = arith.addf %29, %33 : vector<1x32xf32>
    %c0_17 = arith.constant 0 : index
    %c0_18 = arith.constant 0 : index
    %35 = vector.load %arg9[%c0_17, %c0_18] : memref<1x32xf32, #tpu.memory_space<vmem>>, vector<1x32xf32>
    tpu.vector_store %arg9[%c0_17, %c0_18], %34 {strides = array<i32>} : memref<1x32xf32, #tpu.memory_space<vmem>>, vector<1x32xf32>,
    return
  }
  func.func @transform_0(%arg0: i32) -> (i32, i32) {
    %c0_i32 = arith.constant 0 : i32
    %c0_i32_0 = arith.constant 0 : i32
    return %arg0, %c0_i32 : i32, i32
  }
  func.func @transform_1(%arg0: i32) -> (i32, i32) {
    %c0_i32 = arith.constant 0 : i32
    %c0_i32_0 = arith.constant 0 : i32
    return %arg0, %c0_i32 : i32, i32
  }
  func.func @transform_2(%arg0: i32) -> (i32, i32) {
    %c0_i32 = arith.constant 0 : i32
    %c0_i32_0 = arith.constant 0 : i32
    return %arg0, %c0_i32 : i32, i32
  }
  func.func @transform_3(%arg0: i32) -> (i32, i32) {
    %c0_i32 = arith.constant 0 : i32
    %c0_i32_0 = arith.constant 0 : i32
    return %c0_i32, %arg0 : i32, i32
  }
  func.func @transform_4(%arg0: i32) -> (i32, i32) {
    %c0_i32 = arith.constant 0 : i32
    %c0_i32_0 = arith.constant 0 : i32
    %c0_i32_1 = arith.constant 0 : i32
    return %c0_i32, %c0_i32_0 : i32, i32
  }
  func.func @transform_5(%arg0: i32) -> (i32, i32) {
    %c0_i32 = arith.constant 0 : i32
    %c0_i32_0 = arith.constant 0 : i32
    %c0_i32_1 = arith.constant 0 : i32
    return %c0_i32, %c0_i32_0 : i32, i32
  }
  func.func @transform_6(%arg0: i32) -> (i32, i32) {
    %c0_i32 = arith.constant 0 : i32
    %c0_i32_0 = arith.constant 0 : i32
    %c0_i32_1 = arith.constant 0 : i32
    return %c0_i32, %c0_i32_0 : i32, i32
  }
  func.func @transform_7(%arg0: i32) -> i32 {
    %c0_i32 = arith.constant 0 : i32
    %c0_i32_0 = arith.constant 0 : i32
    return %c0_i32 : i32
  }
  func.func @transform_8(%arg0: i32) -> (i32, i32) {
    %c0_i32 = arith.constant 0 : i32
    %c0_i32_0 = arith.constant 0 : i32
    return %c0_i32, %arg0 : i32, i32
  }
}

module attributes {stable_mosaic.version = 11 : i64} {
  func.func @_flexte_kernel(%arg0: i32, %arg1: memref<32x24xf32, #tpu.memory_space<vmem>>, %arg2: memref<32x12xf32, #tpu.memory_space<vmem>>, %arg3: memref<32x12xf32, #tpu.memory_space<vmem>>, %arg4: memref<32x1xf32, #tpu.memory_space<vmem>>, %arg5: memref<24x3xf32, #tpu.memory_space<vmem>>, %arg6: memref<12x1xf32, #tpu.memory_space<vmem>>, %arg7: memref<12x1xf32, #tpu.memory_space<vmem>>, %arg8: memref<3xf32, #tpu.memory_space<smem>>, %arg9: memref<32x1xf32, #tpu.memory_space<vmem>>) attributes {dimension_semantics = [#tpu.dimension_semantics<parallel>], iteration_bounds = array<i64: 1>, scalar_prefetch = 0 : i64, scratch_operands = 0 : i64, tpu.core_type = #tpu.core_type<tc>, window_params = [{transform_indices = @transform_0, window_bounds = array<i64: 32, 24>}, {transform_indices = @transform_1, window_bounds = array<i64: 32, 12>}, {transform_indices = @transform_2, window_bounds = array<i64: 32, 12>}, {transform_indices = @transform_3, window_bounds = array<i64: 32, 1>}, {pipeline_mode = #tpu.pipeline_mode<synchronous>, transform_indices = @transform_4, window_bounds = array<i64: 24, 3>}, {pipeline_mode = #tpu.pipeline_mode<synchronous>, transform_indices = @transform_5, window_bounds = array<i64: 12, 1>}, {pipeline_mode = #tpu.pipeline_mode<synchronous>, transform_indices = @transform_6, window_bounds = array<i64: 12, 1>}, {transform_indices = @transform_7, window_bounds = array<i64: 3>}, {transform_indices = @transform_8, window_bounds = array<i64: 32, 1>}]} {
    %c0 = arith.constant 0 : index
    %c0_0 = arith.constant 0 : index
    %0 = vector.load %arg1[%c0, %c0_0] : memref<32x24xf32, #tpu.memory_space<vmem>>, vector<32x24xf32>
    %c0_1 = arith.constant 0 : index
    %c0_2 = arith.constant 0 : index
    %1 = vector.load %arg2[%c0_1, %c0_2] : memref<32x12xf32, #tpu.memory_space<vmem>>, vector<32x12xf32>
    %c0_3 = arith.constant 0 : index
    %c0_4 = arith.constant 0 : index
    %2 = vector.load %arg3[%c0_3, %c0_4] : memref<32x12xf32, #tpu.memory_space<vmem>>, vector<32x12xf32>
    %c0_5 = arith.constant 0 : index
    %c0_6 = arith.constant 0 : index
    %3 = vector.load %arg5[%c0_5, %c0_6] : memref<24x3xf32, #tpu.memory_space<vmem>>, vector<24x3xf32>
    %cst = arith.constant dense<0.000000e+00> : vector<32x3xf32>
    %4 = tpu.matmul %0, %3, %cst {dimension_numbers = #tpu.dot_dimension_numbers<[1], [0], [0], [1], [0, 0, 1, 1], [], []>} : vector<32x24xf32>, vector<24x3xf32>, vector<32x3xf32> -> vector<32x3xf32>
    %5 = vector.extract_strided_slice %4 {offsets = [0, 0], sizes = [32, 1], strides = [1, 1]} : vector<32x3xf32> to vector<32x1xf32>
    %c0_7 = arith.constant 0 : index
    %c0_8 = arith.constant 0 : index
    %6 = vector.load %arg6[%c0_7, %c0_8] : memref<12x1xf32, #tpu.memory_space<vmem>>, vector<12x1xf32>
    %cst_9 = arith.constant dense<0.000000e+00> : vector<32x1xf32>
    %7 = tpu.matmul %1, %6, %cst_9 {dimension_numbers = #tpu.dot_dimension_numbers<[1], [0], [0], [1], [0, 0, 1, 1], [], []>} : vector<32x12xf32>, vector<12x1xf32>, vector<32x1xf32> -> vector<32x1xf32>
    %8 = arith.addf %5, %7 : vector<32x1xf32>
    %9 = vector.extract_strided_slice %4 {offsets = [0, 1], sizes = [32, 1], strides = [1, 1]} : vector<32x3xf32> to vector<32x1xf32>
    %c0_10 = arith.constant 0 : index
    %c0_11 = arith.constant 0 : index
    %10 = vector.load %arg7[%c0_10, %c0_11] : memref<12x1xf32, #tpu.memory_space<vmem>>, vector<12x1xf32>
    %cst_12 = arith.constant dense<0.000000e+00> : vector<32x1xf32>
    %11 = tpu.matmul %2, %10, %cst_12 {dimension_numbers = #tpu.dot_dimension_numbers<[1], [0], [0], [1], [0, 0, 1, 1], [], []>} : vector<32x12xf32>, vector<12x1xf32>, vector<32x1xf32> -> vector<32x1xf32>
    %12 = arith.addf %9, %11 : vector<32x1xf32>
    %c0_13 = arith.constant 0 : index
    %c0_14 = arith.constant 0 : index
    %13 = vector.load %arg4[%c0_13, %c0_14] : memref<32x1xf32, #tpu.memory_space<vmem>>, vector<32x1xf32>
    %cst_15 = arith.constant 1.000000e+00 : f32
    %14 = vector.broadcast %cst_15 : f32 to vector<32x1xf32>
    %15 = arith.subf %14, %13 : vector<32x1xf32>
    %c0_16 = arith.constant 0 : index
    %16 = memref.load %arg8[%c0_16] : memref<3xf32, #tpu.memory_space<smem>>
    %17 = vector.broadcast %16 : f32 to vector<32x1xf32>
    %18 = arith.addf %8, %17 : vector<32x1xf32>
    %19 = arith.mulf %15, %18 : vector<32x1xf32>
    %c1 = arith.constant 1 : index
    %20 = memref.load %arg8[%c1] : memref<3xf32, #tpu.memory_space<smem>>
    %21 = vector.broadcast %20 : f32 to vector<32x1xf32>
    %22 = arith.addf %12, %21 : vector<32x1xf32>
    %23 = arith.mulf %13, %22 : vector<32x1xf32>
    %24 = arith.addf %19, %23 : vector<32x1xf32>
    %25 = vector.extract_strided_slice %4 {offsets = [0, 2], sizes = [32, 1], strides = [1, 1]} : vector<32x3xf32> to vector<32x1xf32>
    %c2 = arith.constant 2 : index
    %26 = memref.load %arg8[%c2] : memref<3xf32, #tpu.memory_space<smem>>
    %27 = vector.broadcast %26 : f32 to vector<32x1xf32>
    %28 = arith.addf %25, %27 : vector<32x1xf32>
    %29 = arith.addf %24, %28 : vector<32x1xf32>
    %c0_17 = arith.constant 0 : index
    %c0_18 = arith.constant 0 : index
    %30 = vector.load %arg9[%c0_17, %c0_18] : memref<32x1xf32, #tpu.memory_space<vmem>>, vector<32x1xf32>
    tpu.vector_store %arg9[%c0_17, %c0_18], %29 {strides = array<i32>} : memref<32x1xf32, #tpu.memory_space<vmem>>, vector<32x1xf32>,
    return
  }
  func.func @transform_0(%arg0: i32) -> (i32, i32) {
    %c0_i32 = arith.constant 0 : i32
    %c0_i32_0 = arith.constant 0 : i32
    return %arg0, %c0_i32 : i32, i32
  }
  func.func @transform_1(%arg0: i32) -> (i32, i32) {
    %c0_i32 = arith.constant 0 : i32
    %c0_i32_0 = arith.constant 0 : i32
    return %arg0, %c0_i32 : i32, i32
  }
  func.func @transform_2(%arg0: i32) -> (i32, i32) {
    %c0_i32 = arith.constant 0 : i32
    %c0_i32_0 = arith.constant 0 : i32
    return %arg0, %c0_i32 : i32, i32
  }
  func.func @transform_3(%arg0: i32) -> (i32, i32) {
    %c0_i32 = arith.constant 0 : i32
    %c0_i32_0 = arith.constant 0 : i32
    return %arg0, %c0_i32 : i32, i32
  }
  func.func @transform_4(%arg0: i32) -> (i32, i32) {
    %c0_i32 = arith.constant 0 : i32
    %c0_i32_0 = arith.constant 0 : i32
    %c0_i32_1 = arith.constant 0 : i32
    return %c0_i32, %c0_i32_0 : i32, i32
  }
  func.func @transform_5(%arg0: i32) -> (i32, i32) {
    %c0_i32 = arith.constant 0 : i32
    %c0_i32_0 = arith.constant 0 : i32
    %c0_i32_1 = arith.constant 0 : i32
    return %c0_i32, %c0_i32_0 : i32, i32
  }
  func.func @transform_6(%arg0: i32) -> (i32, i32) {
    %c0_i32 = arith.constant 0 : i32
    %c0_i32_0 = arith.constant 0 : i32
    %c0_i32_1 = arith.constant 0 : i32
    return %c0_i32, %c0_i32_0 : i32, i32
  }
  func.func @transform_7(%arg0: i32) -> i32 {
    %c0_i32 = arith.constant 0 : i32
    %c0_i32_0 = arith.constant 0 : i32
    return %c0_i32 : i32
  }
  func.func @transform_8(%arg0: i32) -> (i32, i32) {
    %c0_i32 = arith.constant 0 : i32
    %c0_i32_0 = arith.constant 0 : i32
    return %arg0, %c0_i32 : i32, i32
  }
}

</mosaic_0001>

<llo_original>
// kernel: tpu_custom_call.1
$region0: #{tpu_custom_call.1}
  #allocation0 [shape = 'u32[]', space=smem, size = 0x4, offset = 0x4, fixed_abs, tag = 'smem constant byte address 0x4 - core index']
  #allocation1 [shape = 'u32[72,128]{1,0:T(1,128)}', space=vmem, size = 0x9000, scoped, tag = 'internal scratch']
  %s0 = inlined_call_operand.vmem [shape: f32[32,24], index: 0, kind: input, shape index: {}]
  %s1 = inlined_call_operand.vmem [shape: f32[32,12], index: 1, kind: input, shape index: {}]
  %s2 = inlined_call_operand.vmem [shape: f32[32,12], index: 2, kind: input, shape index: {}]
  %s3 = inlined_call_operand.vmem [shape: f32[1,32], index: 3, kind: input, shape index: {}]
  %s4 = inlined_call_operand.vmem [shape: f32[24,3], index: 4, kind: input, shape index: {}]
  %s5 = inlined_call_operand.vmem [shape: f32[12,1], index: 5, kind: input, shape index: {}]
  %s6 = inlined_call_operand.vmem [shape: f32[12,1], index: 6, kind: input, shape index: {}]
  %s7 = inlined_call_operand.vmem [shape: f32[3], index: 7, kind: input, shape index: {}]
  %s8 = inlined_call_operand.hbm [shape: f32[1,32], index: 8, kind: output, shape index: {}]
  %s9 = sld [smem:[#allocation0]]
  $region46: #{tpu_custom_call.1} parent=0
    _
  %s11 = ssub.s32 1, %s9
  %s12 = scalar_select 0, %s11, %s9
  $region1: #{tpu_custom_call.1} parent=0
    #allocation2 [shape = 'u8[512]{0}', space=smem, size = 0x200, scoped, tag = 'input window, operand 7, single buffered']
    #allocation3 [shape = 's32[1]{0}', space=sflag, size = 0x4, scoped, tag = 'scoped memory for tpu_custom_call.1']
    #allocation4 [shape = 's32[1]{0}', space=sflag, size = 0x4, scoped, tag = 'scoped memory for tpu_custom_call.1']
    #allocation5 [shape = 'u8[512]{0}', space=vmem, size = 0x400, scoped, tag = 'output window, operand 0, single buffered']
    %13 = vsyncpa [#allocation4], 0
    %14 = vsyncpa [#allocation3], 0
    // Predicated region
    $region2: #{tpu_custom_call.1} parent=1 // pred_check
      _
    $region3: #{tpu_custom_call.1} parent=1 // pred_check_branch
      %16 = sbr.rel (0) target = $region5
    $region4: #{tpu_custom_call.1} parent=1 // pred_region
      _
    $region5: #{tpu_custom_call.1} parent=1 // pred_fallthru
      _
    // Predicated region
    $region6: #{tpu_custom_call.1} parent=1 // pred_check
      _
    $region7: #{tpu_custom_call.1} parent=1 // pred_check_branch
      %18 = sbr.rel (0) target = $region9
    $region8: #{tpu_custom_call.1} parent=1 // pred_region
      _
    $region9: #{tpu_custom_call.1} parent=1 // pred_fallthru
      _
    // Predicated region
    $region10: #{tpu_custom_call.1} parent=1 // pred_check
      _
    $region11: #{tpu_custom_call.1} parent=1 // pred_check_branch
      %20 = sbr.rel (0) target = $region13
    $region12: #{tpu_custom_call.1} parent=1 // pred_region
      _
    $region13: #{tpu_custom_call.1} parent=1 // pred_fallthru
      _
    // Predicated region
    $region14: #{tpu_custom_call.1} parent=1 // pred_check
      _
    $region15: #{tpu_custom_call.1} parent=1 // pred_check_branch
      %22 = sbr.rel (0) target = $region17
    $region16: #{tpu_custom_call.1} parent=1 // pred_region
      _
    $region17: #{tpu_custom_call.1} parent=1 // pred_fallthru
      _
    // Predicated region
    $region18: #{tpu_custom_call.1} parent=1 // pred_check
      _
    $region19: #{tpu_custom_call.1} parent=1 // pred_check_branch
      %24 = sbr.rel (0) target = $region21
    $region20: #{tpu_custom_call.1} parent=1 // pred_region
      _
    $region21: #{tpu_custom_call.1} parent=1 // pred_fallthru
      _
    // Predicated region
    $region22: #{tpu_custom_call.1} parent=1 // pred_check
      _
    $region23: #{tpu_custom_call.1} parent=1 // pred_check_branch
      %26 = sbr.rel (0) target = $region25
    $region24: #{tpu_custom_call.1} parent=1 // pred_region
      _
    $region25: #{tpu_custom_call.1} parent=1 // pred_fallthru
      _
    // Predicated region
    $region26: #{tpu_custom_call.1} parent=1 // pred_check
      _
    $region27: #{tpu_custom_call.1} parent=1 // pred_check_branch
      %28 = sbr.rel (0) target = $region29
    $region28: #{tpu_custom_call.1} parent=1 // pred_region
      _
    $region29: #{tpu_custom_call.1} parent=1 // pred_fallthru
      _
    // Predicated region
    $region30: #{tpu_custom_call.1} parent=1 // pred_check
      _
    $region31: #{tpu_custom_call.1} parent=1 // pred_check_branch
      %30 = sbr.rel (0) target = $region33
    $region32: #{tpu_custom_call.1} parent=1 // pred_region
      %32 = vsyncadd [#allocation4], 0
      %s34 = sshll.u32 %s7, 4
      %s35 = int_to_ptr.vmem [resolvable:$true] %s34
      %37 = dma.vmem_to_smem %s35, 16, [#allocation2], [#allocation4]
    $region33: #{tpu_custom_call.1} parent=1 // pred_fallthru
      _
    // Predicated region
    $region34: #{tpu_custom_call.1} parent=1 // pred_check
      _
    $region35: #{tpu_custom_call.1} parent=1 // pred_check_branch
      %39 = sbr.rel (0) target = $region37
    $region36: #{tpu_custom_call.1} parent=1 // pred_region
      %41 = dma.done [#allocation4], 16
    $region37: #{tpu_custom_call.1} parent=1 // pred_fallthru
      _
    %42 = sfence
    %v43 = vld [vmem:[%s0] sm:$0xff]
    %v44 = vld [vmem:[%s0 + $0x8] sm:$0xff]
    %v45 = vld [vmem:[%s0 + $0x10] sm:$0xff]
    %v46 = vld [vmem:[%s0 + $0x18] sm:$0xff]
    %v47 = vld [vmem:[%s1] sm:$0xff]
    %v48 = vld [vmem:[%s1 + $0x8] sm:$0xff]
    %v49 = vld [vmem:[%s1 + $0x10] sm:$0xff]
    %v50 = vld [vmem:[%s1 + $0x18] sm:$0xff]
    %v51 = vld [vmem:[%s2] sm:$0xff]
    %v52 = vld [vmem:[%s2 + $0x8] sm:$0xff]
    %v53 = vld [vmem:[%s2 + $0x10] sm:$0xff]
    %v54 = vld [vmem:[%s2 + $0x18] sm:$0xff]
    %v55 = vld [vmem:[%s4] sm:$0xff]
    %v56 = vld [vmem:[%s4 + $0x8] sm:$0xff]
    %v57 = vld [vmem:[%s4 + $0x10] sm:$0xff]
    %vm58 = vcmask 195584
    %v60 = vsel %vm58, %v43, 0
    %v63 = vsel %vm58, %v44, 0
    %v66 = vsel %vm58, %v45, 0
    %v69 = vsel %vm58, %v46, 0
    %71 = vmatpush.msra.mxu0 0.0
    %72 = vmatpush.msra.mxu0 0.0
    %73 = vmatpush.msra.mxu0 0.0
    %74 = vmatpush.msra.mxu0 0.0
    %75 = vmatpush.msra.mxu0 0.0
    %76 = vmatpush.msra.mxu0 0.0
    %77 = vmatpush.msra.mxu0 0.0
    %78 = vmatpush.msra.mxu0 0.0
    %79 = vmatpush.msra.mxu0 0.0
    %80 = vmatpush.msra.mxu0 0.0
    %81 = vmatpush.msra.mxu0 0.0
    %82 = vmatpush.msra.mxu0 0.0
    %83 = vmatpush.msra.mxu0 0.0
    %84 = vmatpush.msra.mxu0 %v57
    %85 = vmatpush.msra.mxu0 %v56
    %86 = vmatpush.msra.mxu0 %v55
    %87 = vmatmul.f32.gmra.mxu0 %v60
    %v88 = vpop.f32.mrf.mxu0
    %v89 = vadd.f32 0.0, %v88
    %90 = vmatmul.f32.gmra.mxu0 %v63
    %v91 = vpop.f32.mrf.mxu0
    %v92 = vadd.f32 0.0, %v91
    %93 = vmatmul.f32.gmra.mxu0 %v66
    %v94 = vpop.f32.mrf.mxu0
    %v95 = vadd.f32 0.0, %v94
    %96 = vmatmul.f32.gmra.mxu0 %v69
    %v97 = vpop.f32.mrf.mxu0
    %v98 = vadd.f32 0.0, %v97
    %99 = vdwg.mxu0
    %v100 = vld [vmem:[%s5] sm:$0xff]
    %v101 = vld [vmem:[%s5 + $0x8] sm:$0xf]
    %vm102 = vcmask 97280
    %v104 = vsel %vm102, %v47, 0
    %v107 = vsel %vm102, %v48, 0
    %v110 = vsel %vm102, %v49, 0
    %v113 = vsel %vm102, %v50, 0
    %vm115 = vcmask 1043456
    %v117 = vsel %vm115, %v101, 0
    %119 = vmatpush.msra.mxu0 0.0
    %120 = vmatpush.msra.mxu0 0.0
    %121 = vmatpush.msra.mxu0 0.0
    %122 = vmatpush.msra.mxu0 0.0
    %123 = vmatpush.msra.mxu0 0.0
    %124 = vmatpush.msra.mxu0 0.0
    %125 = vmatpush.msra.mxu0 0.0
    %126 = vmatpush.msra.mxu0 0.0
    %127 = vmatpush.msra.mxu0 0.0
    %128 = vmatpush.msra.mxu0 0.0
    %129 = vmatpush.msra.mxu0 0.0
    %130 = vmatpush.msra.mxu0 0.0
    %131 = vmatpush.msra.mxu0 0.0
    %132 = vmatpush.msra.mxu0 0.0
    %133 = vmatpush.msra.mxu0 %v117
    %134 = vmatpush.msra.mxu0 %v100
    %135 = vmatmul.f32.gmra.mxu0 %v104
    %v136 = vpop.f32.mrf.mxu0
    %v137 = vadd.f32 0.0, %v136
    %138 = vmatmul.f32.gmra.mxu0 %v107
    %v139 = vpop.f32.mrf.mxu0
    %v140 = vadd.f32 0.0, %v139
    %141 = vmatmul.f32.gmra.mxu0 %v110
    %v142 = vpop.f32.mrf.mxu0
    %v143 = vadd.f32 0.0, %v142
    %144 = vmatmul.f32.gmra.mxu0 %v113
    %v145 = vpop.f32.mrf.mxu0
    %v146 = vadd.f32 0.0, %v145
    %147 = vdwg.mxu0
    %v148 = vadd.f32 %v89, %v137
    %v149 = vadd.f32 %v92, %v140
    %v150 = vadd.f32 %v95, %v143
    %v151 = vadd.f32 %v98, %v146
    %v152 = vld [vmem:[%s6] sm:$0xff]
    %v153 = vld [vmem:[%s6 + $0x8] sm:$0xf]
    %v155 = vsel %vm102, %v51, 0
    %v158 = vsel %vm102, %v52, 0
    %v161 = vsel %vm102, %v53, 0
    %v164 = vsel %vm102, %v54, 0
    %v167 = vsel %vm115, %v153, 0
    %169 = vmatpush.msra.mxu0 0.0
    %170 = vmatpush.msra.mxu0 0.0
    %171 = vmatpush.msra.mxu0 0.0
    %172 = vmatpush.msra.mxu0 0.0
    %173 = vmatpush.msra.mxu0 0.0
    %174 = vmatpush.msra.mxu0 0.0
    %175 = vmatpush.msra.mxu0 0.0
    %176 = vmatpush.msra.mxu0 0.0
    %177 = vmatpush.msra.mxu0 0.0
    %178 = vmatpush.msra.mxu0 0.0
    %179 = vmatpush.msra.mxu0 0.0
    %180 = vmatpush.msra.mxu0 0.0
    %181 = vmatpush.msra.mxu0 0.0
    %182 = vmatpush.msra.mxu0 0.0
    %183 = vmatpush.msra.mxu0 %v167
    %184 = vmatpush.msra.mxu0 %v152
    %185 = vmatmul.f32.gmra.mxu0 %v155
    %v186 = vpop.f32.mrf.mxu0
    %v187 = vadd.f32 0.0, %v186
    %188 = vmatmul.f32.gmra.mxu0 %v158
    %v189 = vpop.f32.mrf.mxu0
    %v190 = vadd.f32 0.0, %v189
    %191 = vmatmul.f32.gmra.mxu0 %v161
    %v192 = vpop.f32.mrf.mxu0
    %v193 = vadd.f32 0.0, %v192
    %194 = vmatmul.f32.gmra.mxu0 %v164
    %v195 = vpop.f32.mrf.mxu0
    %v196 = vadd.f32 0.0, %v195
    %197 = vdwg.mxu0
    %202 = vrot.lane.b32.xlu0 %v187, 1
    %v203 = vpop.permute.xlu0 %202
    %204 = vrot.lane.b32.xlu0 %v190, 1
    %v205 = vpop.permute.xlu0 %204
    %206 = vrot.lane.b32.xlu0 %v193, 1
    %v207 = vpop.permute.xlu0 %206
    %208 = vrot.lane.b32.xlu0 %v196, 1
    %v209 = vpop.permute.xlu0 %208
    %v214 = vadd.f32 %v89, %v203
    %v215 = vadd.f32 %v92, %v205
    %v216 = vadd.f32 %v95, %v207
    %v217 = vadd.f32 %v98, %v209
    %vm218 = vcmask 7168
    %v219 = vsel %vm218, %v148, %v214
    %v220 = vsel %vm218, %v149, %v215
    %v221 = vsel %vm218, %v150, %v216
    %v222 = vsel %vm218, %v151, %v217
    %vm223 = vcmask 15360
    %v224 = vsel %vm223, %v219, %v89
    %v225 = vsel %vm223, %v220, %v92
    %v226 = vsel %vm223, %v221, %v95
    %v227 = vsel %vm223, %v222, %v98
    %228 = vxpose.xlu0.b32.start [1/16] %v224, 128
    %229 = vxpose.xlu0.b32.cont [2/16] %v225, 128
    %230 = vxpose.xlu0.b32.cont [3/16] %v226, 128
    %231 = vxpose.xlu0.b32.cont [4/16] %v227, 128
    %232 = vxpose.xlu0.b32.cont [5/16] 0.0, 128
    %233 = vxpose.xlu0.b32.cont [6/16] 0.0, 128
    %234 = vxpose.xlu0.b32.cont [7/16] 0.0, 128
    %235 = vxpose.xlu0.b32.cont [8/16] 0.0, 128
    %236 = vxpose.xlu0.b32.cont [9/16] 0.0, 128
    %237 = vxpose.xlu0.b32.cont [10/16] 0.0, 128
    %238 = vxpose.xlu0.b32.cont [11/16] 0.0, 128
    %239 = vxpose.xlu0.b32.cont [12/16] 0.0, 128
    %240 = vxpose.xlu0.b32.cont [13/16] 0.0, 128
    %241 = vxpose.xlu0.b32.cont [14/16] 0.0, 128
    %242 = vxpose.xlu0.b32.cont [15/16] 0.0, 128
    %243 = vxpose.xlu0.b32.end [16/16] 0.0, 128
    %v244 = vpop.trf.xlu0
    %v245 = vpop.trf.xlu0
    %v246 = vpop.trf.xlu0
    %v247 = vpop.trf.xlu0
    %v248 = vpop.trf.xlu0
    %v249 = vpop.trf.xlu0
    %v250 = vpop.trf.xlu0
    %v251 = vpop.trf.xlu0
    %v252 = vpop.trf.xlu0
    %v253 = vpop.trf.xlu0
    %v254 = vpop.trf.xlu0
    %v255 = vpop.trf.xlu0
    %v256 = vpop.trf.xlu0
    %v257 = vpop.trf.xlu0
    %v258 = vpop.trf.xlu0
    %v259 = vpop.trf.xlu0
    %v260 = vld [vmem:[%s3] sm:$0x1]
    %v261 = vsub.f32 1.0, %v260
    %s262 = sld [smem:[#allocation2]]
    %v263 = vstv %s262
    %v264 = vadd.f32 %v244, %v263
    %v265 = vmul.f32 %v261, %v264
    %s266 = sld [smem:[#allocation2 + $0x1]]
    %v267 = vstv %s266
    %v268 = vadd.f32 %v244, %v267
    %270 = vst [vmem:[#allocation1] sm:$0xff] %v268
    %s271 = scalar_lea.vmem [#allocation1], 1
    %v272 = vld [vmem:[%s271] ss:$9 sm:$0xff]
    %v274 = vmul.f32 %v260, %v272
    %v275 = vadd.f32 %v265, %v274
    %s276 = sld [smem:[#allocation2 + $0x2]]
    %v277 = vstv %s276
    %v278 = vadd.f32 %v244, %v277
    %280 = vst [vmem:[#allocation1] sm:$0xff] %v278
    %s281 = scalar_lea.vmem [#allocation1], 2
    %v282 = vld [vmem:[%s281] ss:$9 sm:$0xff]
    %v284 = vadd.f32 %v275, %v282
    %vm285 = vcmask 253952
    %286 = vst.msk [vmem:[#allocation5] sm:$0x1] %vm285, %v284
    // Predicated region
    $region38: #{tpu_custom_call.1} parent=1 // pred_check
      _
    $region39: #{tpu_custom_call.1} parent=1 // pred_check_branch
      %288 = sbr.rel (0) target = $region41
    $region40: #{tpu_custom_call.1} parent=1 // pred_region
      %290 = vsyncadd [#allocation3], 0
      %s292 = sshll.u32 [#allocation5], 4
      %s293 = int_to_ptr.vmem [resolvable:$true] %s292
      %s294 = sshll.u32 %s8, 4
      %s295 = int_to_ptr.hbm [resolvable:$true] %s294
      %297 = dma.vmem_to_hbm [thread:$0]  %s293, 16, %s295, [#allocation3]
    $region41: #{tpu_custom_call.1} parent=1 // pred_fallthru
      _
    // Predicated region
    $region42: #{tpu_custom_call.1} parent=1 // pred_check
      _
    $region43: #{tpu_custom_call.1} parent=1 // pred_check_branch
      %299 = sbr.rel (0) target = $region45
    $region44: #{tpu_custom_call.1} parent=1 // pred_region
      %301 = dma.done [#allocation3], 16
    $region45: #{tpu_custom_call.1} parent=1 // pred_fallthru
      _
    %302 = vsyncpa [#allocation3], 1
    %303 = vsyncpa [#allocation4], 1

// kernel: tpu_custom_call.1
$region0: #{tpu_custom_call.1}
  #allocation0 [shape = 'u32[]', space=smem, size = 0x4, offset = 0x4, fixed_abs, tag = 'smem constant byte address 0x4 - core index']
  #allocation1 [shape = 'u32[72,128]{1,0:T(1,128)}', space=vmem, size = 0x9000, scoped, tag = 'internal scratch']
  %s0 = inlined_call_operand.vmem [shape: f32[32,24], index: 0, kind: input, shape index: {}]
  %s1 = inlined_call_operand.vmem [shape: f32[32,12], index: 1, kind: input, shape index: {}]
  %s2 = inlined_call_operand.vmem [shape: f32[32,12], index: 2, kind: input, shape index: {}]
  %s3 = inlined_call_operand.vmem [shape: f32[32,1], index: 3, kind: input, shape index: {}]
  %s4 = inlined_call_operand.vmem [shape: f32[24,3], index: 4, kind: input, shape index: {}]
  %s5 = inlined_call_operand.vmem [shape: f32[12,1], index: 5, kind: input, shape index: {}]
  %s6 = inlined_call_operand.vmem [shape: f32[12,1], index: 6, kind: input, shape index: {}]
  %s7 = inlined_call_operand.vmem [shape: f32[3], index: 7, kind: input, shape index: {}]
  %s8 = inlined_call_operand.vmem [shape: f32[32,1], index: 8, kind: output, shape index: {}]
  %s9 = sld [smem:[#allocation0]]
  $region46: #{tpu_custom_call.1} parent=0
    _
  %s11 = ssub.s32 1, %s9
  %s12 = scalar_select 0, %s11, %s9
  $region1: #{tpu_custom_call.1} parent=0
    #allocation2 [shape = 'u8[512]{0}', space=smem, size = 0x200, scoped, tag = 'input window, operand 7, single buffered']
    #allocation3 [shape = 's32[1]{0}', space=sflag, size = 0x4, scoped, tag = 'scoped memory for tpu_custom_call.1']
    %13 = vsyncpa [#allocation3], 0
    // Predicated region
    $region2: #{tpu_custom_call.1} parent=1 // pred_check
      _
    $region3: #{tpu_custom_call.1} parent=1 // pred_check_branch
      %15 = sbr.rel (0) target = $region5
    $region4: #{tpu_custom_call.1} parent=1 // pred_region
      _
    $region5: #{tpu_custom_call.1} parent=1 // pred_fallthru
      _
    // Predicated region
    $region6: #{tpu_custom_call.1} parent=1 // pred_check
      _
    $region7: #{tpu_custom_call.1} parent=1 // pred_check_branch
      %17 = sbr.rel (0) target = $region9
    $region8: #{tpu_custom_call.1} parent=1 // pred_region
      _
    $region9: #{tpu_custom_call.1} parent=1 // pred_fallthru
      _
    // Predicated region
    $region10: #{tpu_custom_call.1} parent=1 // pred_check
      _
    $region11: #{tpu_custom_call.1} parent=1 // pred_check_branch
      %19 = sbr.rel (0) target = $region13
    $region12: #{tpu_custom_call.1} parent=1 // pred_region
      _
    $region13: #{tpu_custom_call.1} parent=1 // pred_fallthru
      _
    // Predicated region
    $region14: #{tpu_custom_call.1} parent=1 // pred_check
      _
    $region15: #{tpu_custom_call.1} parent=1 // pred_check_branch
      %21 = sbr.rel (0) target = $region17
    $region16: #{tpu_custom_call.1} parent=1 // pred_region
      _
    $region17: #{tpu_custom_call.1} parent=1 // pred_fallthru
      _
    // Predicated region
    $region18: #{tpu_custom_call.1} parent=1 // pred_check
      _
    $region19: #{tpu_custom_call.1} parent=1 // pred_check_branch
      %23 = sbr.rel (0) target = $region21
    $region20: #{tpu_custom_call.1} parent=1 // pred_region
      _
    $region21: #{tpu_custom_call.1} parent=1 // pred_fallthru
      _
    // Predicated region
    $region22: #{tpu_custom_call.1} parent=1 // pred_check
      _
    $region23: #{tpu_custom_call.1} parent=1 // pred_check_branch
      %25 = sbr.rel (0) target = $region25
    $region24: #{tpu_custom_call.1} parent=1 // pred_region
      _
    $region25: #{tpu_custom_call.1} parent=1 // pred_fallthru
      _
    // Predicated region
    $region26: #{tpu_custom_call.1} parent=1 // pred_check
      _
    $region27: #{tpu_custom_call.1} parent=1 // pred_check_branch
      %27 = sbr.rel (0) target = $region29
    $region28: #{tpu_custom_call.1} parent=1 // pred_region
      _
    $region29: #{tpu_custom_call.1} parent=1 // pred_fallthru
      _
    // Predicated region
    $region30: #{tpu_custom_call.1} parent=1 // pred_check
      _
    $region31: #{tpu_custom_call.1} parent=1 // pred_check_branch
      %29 = sbr.rel (0) target = $region33
    $region32: #{tpu_custom_call.1} parent=1 // pred_region
      %31 = vsyncadd [#allocation3], 0
      %s33 = sshll.u32 %s7, 4
      %s34 = int_to_ptr.vmem [resolvable:$true] %s33
      %36 = dma.vmem_to_smem %s34, 16, [#allocation2], [#allocation3]
    $region33: #{tpu_custom_call.1} parent=1 // pred_fallthru
      _
    // Predicated region
    $region34: #{tpu_custom_call.1} parent=1 // pred_check
      _
    $region35: #{tpu_custom_call.1} parent=1 // pred_check_branch
      %38 = sbr.rel (0) target = $region37
    $region36: #{tpu_custom_call.1} parent=1 // pred_region
      %40 = dma.done [#allocation3], 16
    $region37: #{tpu_custom_call.1} parent=1 // pred_fallthru
      _
    %41 = sfence
    %v42 = vld [vmem:[%s0] sm:$0xff]
    %v43 = vld [vmem:[%s0 + $0x8] sm:$0xff]
    %v44 = vld [vmem:[%s0 + $0x10] sm:$0xff]
    %v45 = vld [vmem:[%s0 + $0x18] sm:$0xff]
    %v46 = vld [vmem:[%s1] sm:$0xff]
    %v47 = vld [vmem:[%s1 + $0x8] sm:$0xff]
    %v48 = vld [vmem:[%s1 + $0x10] sm:$0xff]
    %v49 = vld [vmem:[%s1 + $0x18] sm:$0xff]
    %v50 = vld [vmem:[%s2] sm:$0xff]
    %v51 = vld [vmem:[%s2 + $0x8] sm:$0xff]
    %v52 = vld [vmem:[%s2 + $0x10] sm:$0xff]
    %v53 = vld [vmem:[%s2 + $0x18] sm:$0xff]
    %v54 = vld [vmem:[%s4] sm:$0xff]
    %v55 = vld [vmem:[%s4 + $0x8] sm:$0xff]
    %v56 = vld [vmem:[%s4 + $0x10] sm:$0xff]
    %vm57 = vcmask 195584
    %v59 = vsel %vm57, %v42, 0
    %v62 = vsel %vm57, %v43, 0
    %v65 = vsel %vm57, %v44, 0
    %v68 = vsel %vm57, %v45, 0
    %70 = vmatpush.msra.mxu0 0.0
    %71 = vmatpush.msra.mxu0 0.0
    %72 = vmatpush.msra.mxu0 0.0
    %73 = vmatpush.msra.mxu0 0.0
    %74 = vmatpush.msra.mxu0 0.0
    %75 = vmatpush.msra.mxu0 0.0
    %76 = vmatpush.msra.mxu0 0.0
    %77 = vmatpush.msra.mxu0 0.0
    %78 = vmatpush.msra.mxu0 0.0
    %79 = vmatpush.msra.mxu0 0.0
    %80 = vmatpush.msra.mxu0 0.0
    %81 = vmatpush.msra.mxu0 0.0
    %82 = vmatpush.msra.mxu0 0.0
    %83 = vmatpush.msra.mxu0 %v56
    %84 = vmatpush.msra.mxu0 %v55
    %85 = vmatpush.msra.mxu0 %v54
    %86 = vmatmul.f32.gmra.mxu0 %v59
    %v87 = vpop.f32.mrf.mxu0
    %v88 = vadd.f32 0.0, %v87
    %89 = vmatmul.f32.gmra.mxu0 %v62
    %v90 = vpop.f32.mrf.mxu0
    %v91 = vadd.f32 0.0, %v90
    %92 = vmatmul.f32.gmra.mxu0 %v65
    %v93 = vpop.f32.mrf.mxu0
    %v94 = vadd.f32 0.0, %v93
    %95 = vmatmul.f32.gmra.mxu0 %v68
    %v96 = vpop.f32.mrf.mxu0
    %v97 = vadd.f32 0.0, %v96
    %98 = vdwg.mxu0
    %v99 = vld [vmem:[%s5] sm:$0xff]
    %v100 = vld [vmem:[%s5 + $0x8] sm:$0xf]
    %vm101 = vcmask 97280
    %v103 = vsel %vm101, %v46, 0
    %v106 = vsel %vm101, %v47, 0
    %v109 = vsel %vm101, %v48, 0
    %v112 = vsel %vm101, %v49, 0
    %vm114 = vcmask 1043456
    %v116 = vsel %vm114, %v100, 0
    %118 = vmatpush.msra.mxu0 0.0
    %119 = vmatpush.msra.mxu0 0.0
    %120 = vmatpush.msra.mxu0 0.0
    %121 = vmatpush.msra.mxu0 0.0
    %122 = vmatpush.msra.mxu0 0.0
    %123 = vmatpush.msra.mxu0 0.0
    %124 = vmatpush.msra.mxu0 0.0
    %125 = vmatpush.msra.mxu0 0.0
    %126 = vmatpush.msra.mxu0 0.0
    %127 = vmatpush.msra.mxu0 0.0
    %128 = vmatpush.msra.mxu0 0.0
    %129 = vmatpush.msra.mxu0 0.0
    %130 = vmatpush.msra.mxu0 0.0
    %131 = vmatpush.msra.mxu0 0.0
    %132 = vmatpush.msra.mxu0 %v116
    %133 = vmatpush.msra.mxu0 %v99
    %134 = vmatmul.f32.gmra.mxu0 %v103
    %v135 = vpop.f32.mrf.mxu0
    %v136 = vadd.f32 0.0, %v135
    %137 = vmatmul.f32.gmra.mxu0 %v106
    %v138 = vpop.f32.mrf.mxu0
    %v139 = vadd.f32 0.0, %v138
    %140 = vmatmul.f32.gmra.mxu0 %v109
    %v141 = vpop.f32.mrf.mxu0
    %v142 = vadd.f32 0.0, %v141
    %143 = vmatmul.f32.gmra.mxu0 %v112
    %v144 = vpop.f32.mrf.mxu0
    %v145 = vadd.f32 0.0, %v144
    %146 = vdwg.mxu0
    %v147 = vadd.f32 %v88, %v136
    %v148 = vadd.f32 %v91, %v139
    %v149 = vadd.f32 %v94, %v142
    %v150 = vadd.f32 %v97, %v145
    %v151 = vld [vmem:[%s6] sm:$0xff]
    %v152 = vld [vmem:[%s6 + $0x8] sm:$0xf]
    %v154 = vsel %vm101, %v50, 0
    %v157 = vsel %vm101, %v51, 0
    %v160 = vsel %vm101, %v52, 0
    %v163 = vsel %vm101, %v53, 0
    %v166 = vsel %vm114, %v152, 0
    %168 = vmatpush.msra.mxu0 0.0
    %169 = vmatpush.msra.mxu0 0.0
    %170 = vmatpush.msra.mxu0 0.0
    %171 = vmatpush.msra.mxu0 0.0
    %172 = vmatpush.msra.mxu0 0.0
    %173 = vmatpush.msra.mxu0 0.0
    %174 = vmatpush.msra.mxu0 0.0
    %175 = vmatpush.msra.mxu0 0.0
    %176 = vmatpush.msra.mxu0 0.0
    %177 = vmatpush.msra.mxu0 0.0
    %178 = vmatpush.msra.mxu0 0.0
    %179 = vmatpush.msra.mxu0 0.0
    %180 = vmatpush.msra.mxu0 0.0
    %181 = vmatpush.msra.mxu0 0.0
    %182 = vmatpush.msra.mxu0 %v166
    %183 = vmatpush.msra.mxu0 %v151
    %184 = vmatmul.f32.gmra.mxu0 %v154
    %v185 = vpop.f32.mrf.mxu0
    %v186 = vadd.f32 0.0, %v185
    %187 = vmatmul.f32.gmra.mxu0 %v157
    %v188 = vpop.f32.mrf.mxu0
    %v189 = vadd.f32 0.0, %v188
    %190 = vmatmul.f32.gmra.mxu0 %v160
    %v191 = vpop.f32.mrf.mxu0
    %v192 = vadd.f32 0.0, %v191
    %193 = vmatmul.f32.gmra.mxu0 %v163
    %v194 = vpop.f32.mrf.mxu0
    %v195 = vadd.f32 0.0, %v194
    %196 = vdwg.mxu0
    %201 = vrot.lane.b32.xlu0 %v186, 1
    %v202 = vpop.permute.xlu0 %201
    %203 = vrot.lane.b32.xlu0 %v189, 1
    %v204 = vpop.permute.xlu0 %203
    %205 = vrot.lane.b32.xlu0 %v192, 1
    %v206 = vpop.permute.xlu0 %205
    %207 = vrot.lane.b32.xlu0 %v195, 1
    %v208 = vpop.permute.xlu0 %207
    %v213 = vadd.f32 %v88, %v202
    %v214 = vadd.f32 %v91, %v204
    %v215 = vadd.f32 %v94, %v206
    %v216 = vadd.f32 %v97, %v208
    %v217 = vld [vmem:[%s3] sm:$0xff]
    %v218 = vld [vmem:[%s3 + $0x8] sm:$0xff]
    %v219 = vld [vmem:[%s3 + $0x10] sm:$0xff]
    %v220 = vld [vmem:[%s3 + $0x18] sm:$0xff]
    %v221 = vsub.f32 1.0, %v217
    %v222 = vsub.f32 1.0, %v218
    %v223 = vsub.f32 1.0, %v219
    %v224 = vsub.f32 1.0, %v220
    %s225 = sld [smem:[#allocation2]]
    %v226 = vstv %s225
    %v227 = vadd.f32 %v147, %v226
    %v228 = vadd.f32 %v148, %v226
    %v229 = vadd.f32 %v149, %v226
    %v230 = vadd.f32 %v150, %v226
    %v231 = vmul.f32 %v221, %v227
    %v232 = vmul.f32 %v222, %v228
    %v233 = vmul.f32 %v223, %v229
    %v234 = vmul.f32 %v224, %v230
    %s235 = sld [smem:[#allocation2 + $0x1]]
    %v236 = vstv %s235
    %v237 = vadd.f32 %v213, %v236
    %v238 = vadd.f32 %v214, %v236
    %v239 = vadd.f32 %v215, %v236
    %v240 = vadd.f32 %v216, %v236
    %245 = vrot.lane.b32.xlu0 %v237, 127
    %v246 = vpop.permute.xlu0 %245
    %247 = vrot.lane.b32.xlu0 %v238, 127
    %v248 = vpop.permute.xlu0 %247
    %249 = vrot.lane.b32.xlu0 %v239, 127
    %v250 = vpop.permute.xlu0 %249
    %251 = vrot.lane.b32.xlu0 %v240, 127
    %v252 = vpop.permute.xlu0 %251
    %v257 = vmul.f32 %v217, %v246
    %v258 = vmul.f32 %v218, %v248
    %v259 = vmul.f32 %v219, %v250
    %v260 = vmul.f32 %v220, %v252
    %v261 = vadd.f32 %v231, %v257
    %v262 = vadd.f32 %v232, %v258
    %v263 = vadd.f32 %v233, %v259
    %v264 = vadd.f32 %v234, %v260
    %s265 = sld [smem:[#allocation2 + $0x2]]
    %v266 = vstv %s265
    %v267 = vadd.f32 %v88, %v266
    %v268 = vadd.f32 %v91, %v266
    %v269 = vadd.f32 %v94, %v266
    %v270 = vadd.f32 %v97, %v266
    %275 = vrot.lane.b32.xlu0 %v267, 126
    %v276 = vpop.permute.xlu0 %275
    %277 = vrot.lane.b32.xlu0 %v268, 126
    %v278 = vpop.permute.xlu0 %277
    %279 = vrot.lane.b32.xlu0 %v269, 126
    %v280 = vpop.permute.xlu0 %279
    %281 = vrot.lane.b32.xlu0 %v270, 126
    %v282 = vpop.permute.xlu0 %281
    %v287 = vadd.f32 %v261, %v276
    %v288 = vadd.f32 %v262, %v278
    %v289 = vadd.f32 %v263, %v280
    %v290 = vadd.f32 %v264, %v282
    %vm291 = vcmask 7168
    %292 = vst.msk [vmem:[%s8] sm:$0xff] %vm291, %v287
    %293 = vst.msk [vmem:[%s8 + $0x8] sm:$0xff] %vm291, %v288
    %294 = vst.msk [vmem:[%s8 + $0x10] sm:$0xff] %vm291, %v289
    %295 = vst.msk [vmem:[%s8 + $0x18] sm:$0xff] %vm291, %v290
    // Predicated region
    $region38: #{tpu_custom_call.1} parent=1 // pred_check
      _
    $region39: #{tpu_custom_call.1} parent=1 // pred_check_branch
      %297 = sbr.rel (0) target = $region41
    $region40: #{tpu_custom_call.1} parent=1 // pred_region
      _
    $region41: #{tpu_custom_call.1} parent=1 // pred_fallthru
      _
    // Predicated region
    $region42: #{tpu_custom_call.1} parent=1 // pred_check
      _
    $region43: #{tpu_custom_call.1} parent=1 // pred_check_branch
      %299 = sbr.rel (0) target = $region45
    $region44: #{tpu_custom_call.1} parent=1 // pred_region
      _
    $region45: #{tpu_custom_call.1} parent=1 // pred_fallthru
      _
    %300 = vsyncpa [#allocation3], 1

</llo_original>
